<compile_context>
chip_gen: v5e
topology: v5e:2x2
jax: 0.10.0
libtpu: 0.0.40
codegen_flags: <defaults>
</compile_context>

<pallas_src>
import jax
import jax.numpy as jnp
from jax.experimental import pallas as pl
from jax.experimental.pallas import tpu as pltpu


_LANE = 128
_MIN_STEPS = 8            # target grid steps: enough for v7x's 2 TCs + pipelining
_MIN_SHRINK_TILE = 512    # never shrink tiles below the ~85%-of-roofline width
_MAX_B_BLK = 8            # cap on batches fused per grid step (static unroll bound)
_TARGET_STEP_BYTES = 4 << 20   # stop fusing batches once a step already moves ~4 MiB


def _round_up(x, m):
    return -(-x // m) * m


def _vmem_capacity_bytes():
    """Physical VMEM of the local chip; conservative fallback if query fails."""
    try:
        return int(pltpu.get_tpu_info().vmem_capacity_bytes)
    except Exception:
        return 64 << 20   # v7x physical size: safe lower bound on every generation


def _step_vmem_bytes(b_blk, tile_t, C_in, C_out, itemsize):
    """Per-grid-step VMEM estimate: double-buffered xC/xP/out + weights + f32 acc."""
    io = (4 * C_in + 2 * C_out) * itemsize      # 2 inputs x 2 bufs + 1 output x 2 bufs
    acc = 8 * C_out                              # f32 accumulator temporaries
    fixed = 4 * C_out * C_in * itemsize + (64 << 10)
    return (io + acc) * b_blk * tile_t + fixed


def _choose_blocks(B, C_in, C_out, T, itemsize, budget):
    """Pick (B_blk, TILE_T): biggest tiles that fit `budget`, enough grid steps."""
    t_pad = _round_up(T, _LANE)

    # Largest 128-multiple TILE_T that fits the budget (capped at covering T).
    per_col = (4 * C_in + 2 * C_out) * itemsize + 8 * C_out
    fixed = 4 * C_out * C_in * itemsize + (64 << 10)
    max_cols = max(_LANE, (budget - fixed) // max(per_col, 1))
    tile_t = max(_LANE, min(t_pad, (max_cols // _LANE) * _LANE))

    # Short-T: fuse several batches per step to amortize per-step overhead.
    b_blk = 1
    if tile_t >= t_pad:
        while (b_blk < min(B, _MAX_B_BLK)
               and _step_vmem_bytes(b_blk + 1, tile_t, C_in, C_out, itemsize) <= budget
               and _step_vmem_bytes(b_blk, tile_t, C_in, C_out, itemsize) < _TARGET_STEP_BYTES):
            b_blk += 1

    # Keep enough grid steps for v7x's 2 TensorCores and the DMA pipeline,
    # but never shrink below the ~85%-roofline tile width.
    steps = pl.cdiv(B, b_blk) * pl.cdiv(T, tile_t)
    while steps < _MIN_STEPS and tile_t > _MIN_SHRINK_TILE:
        tile_t = max(_MIN_SHRINK_TILE, _round_up(tile_t // 2, _LANE))
        steps = pl.cdiv(B, b_blk) * pl.cdiv(T, tile_t)

    return b_blk, tile_t


def _dilated_conv1d_kernel(xC_ref, xP_ref, wC_ref, wP_ref, b_ref, o_ref):
    """One (batch-block, T-tile):  y = WC @ xC + WP @ xP + (bC + bP)."""
    b_blk, C_in, tile_t = xC_ref.shape
    C_out = wC_ref.shape[0]

    # Bias hoisted into the accumulator init (one broadcast per grid step).
    bias = jnp.broadcast_to(b_ref[...].astype(jnp.float32), (C_out, tile_t))
    wC = wC_ref[...]
    wP = wP_ref[...]
    tiny = C_in <= 8 and C_out <= 8

    for b in range(b_blk):                       # static unroll, b_blk <= _MAX_B_BLK
        xC = xC_ref[b]                           # (C_in, TILE_T)
        xP = xP_ref[b]
        if tiny:
            # Tiny-channel path: a handful of broadcast VPU FMAs beats a
            # >95%-padded MXU tile.
            acc = bias
            for c in range(C_in):                # static unroll (compile-time C_in)
                acc = acc + wC[:, c:c + 1].astype(jnp.float32) * xC[c:c + 1, :].astype(jnp.float32)
                acc = acc + wP[:, c:c + 1].astype(jnp.float32) * xP[c:c + 1, :].astype(jnp.float32)
        else:
            # MXU path: two matmuls, shared f32 accumulator.
            acc = jnp.dot(wC, xC, preferred_element_type=jnp.float32)
            acc = acc + jnp.dot(wP, xP, preferred_element_type=jnp.float32)
            acc = acc + bias
        o_ref[b] = acc.astype(o_ref.dtype)


def dilated_conv1d(xC, xP, wC, bC, wP, bP, *, compute_dtype=None, out_dtype=None):
    """Fused convC(xC) + convP(xP) with kernel-size-1 convolutions.

    Args:
      xC, xP: (B, C_in, T) float arrays.
      wC, wP: (C_out, C_in) weights (Conv1d weight squeezed on the kernel dim).
      bC, bP: (C_out,) biases.
      compute_dtype: optional dtype (e.g. jnp.bfloat16) for activations/weights
        at the kernel boundary; accumulation stays f32.
      out_dtype: output dtype; defaults to compute_dtype if given, else the
        input dtype (matching the PyTorch module).
    Returns:
      (B, C_out, T) array.
    """
    B, C_in, T = xC.shape
    C_out = wC.shape[0]
    if out_dtype is None:
        out_dtype = compute_dtype if compute_dtype is not None else xC.dtype

    if compute_dtype is not None:
        xC = xC.astype(compute_dtype)
        xP = xP.astype(compute_dtype)
        wC = wC.astype(compute_dtype)
        wP = wP.astype(compute_dtype)

    # Pre-sum biases: one DMA stream, one add per tile (inside the acc init).
    b_sum = (bC.astype(jnp.float32) + bP.astype(jnp.float32)).reshape(C_out, 1)

    itemsize = jnp.dtype(xC.dtype).itemsize
    capacity = _vmem_capacity_bytes()
    budget = capacity // 2                      # tiles use <= half of physical VMEM
    vmem_limit = int(capacity * 0.85)           # scoped limit covers tiles + scratch

    b_blk, tile_t = _choose_blocks(B, C_in, C_out, T, itemsize, budget)
    grid = (pl.cdiv(B, b_blk), pl.cdiv(T, tile_t))

    grid_spec = pltpu.PrefetchScalarGridSpec(
        num_scalar_prefetch=0,
        grid=grid,
        in_specs=[
            pl.BlockSpec((b_blk, C_in, tile_t), lambda bi, ti: (bi, 0, ti)),   # xC
            pl.BlockSpec((b_blk, C_in, tile_t), lambda bi, ti: (bi, 0, ti)),   # xP
            pl.BlockSpec((C_out, C_in), lambda bi, ti: (0, 0)),                # wC
            pl.BlockSpec((C_out, C_in), lambda bi, ti: (0, 0)),                # wP
            pl.BlockSpec((C_out, 1), lambda bi, ti: (0, 0)),                   # bC + bP
        ],
        out_specs=pl.BlockSpec((b_blk, C_out, tile_t), lambda bi, ti: (bi, 0, ti)),
    )

    out_itemsize = jnp.dtype(out_dtype).itemsize
    cost = pl.CostEstimate(
        flops=4 * B * C_in * C_out * T,
        transcendentals=0,
        bytes_accessed=(itemsize * (2 * B * C_in * T + 2 * C_out * C_in)
                        + 4 * C_out
                        + out_itemsize * B * C_out * T),
    )

    return pl.pallas_call(
        _dilated_conv1d_kernel,
        out_shape=jax.ShapeDtypeStruct((B, C_out, T), out_dtype),
        grid_spec=grid_spec,
        compiler_params=pltpu.CompilerParams(
            dimension_semantics=("parallel", "parallel"),
            vmem_limit_bytes=vmem_limit,
        ),
        cost_estimate=cost,
    )(xC, xP, wC, wP, b_sum)


def _reference(xC, xP, wC, bC, wP, bP):
    yC = jnp.einsum("oc,bct->bot", wC, xC) + bC[None, :, None]
    yP = jnp.einsum("oc,bct->bot", wP, xP) + bP[None, :, None]
    return yC + yP


def _make_inputs(key, B, C_in, C_out, T):
    kxC, kxP, kwC, kbC, kwP, kbP = jax.random.split(key, 6)
    xC = jax.random.normal(kxC, (B, C_in, T), dtype=jnp.float32)
    xP = jax.random.normal(kxP, (B, C_in, T), dtype=jnp.float32)
    # Deterministic "Conv1d(in, out, 1, bias=True)" parameters (weight squeezed
    # from (C_out, C_in, 1) to (C_out, C_in)).
    scale = 1.0 / jnp.sqrt(jnp.float32(C_in))
    wC = jax.random.uniform(kwC, (C_out, C_in), jnp.float32, -scale, scale)
    bC = jax.random.uniform(kbC, (C_out,), jnp.float32, -scale, scale)
    wP = jax.random.uniform(kwP, (C_out, C_in), jnp.float32, -scale, scale)
    bP = jax.random.uniform(kbP, (C_out,), jnp.float32, -scale, scale)
    return xC, xP, wC, bC, wP, bP


if __name__ == "__main__":
    key = jax.random.PRNGKey(0)
    k1, k2, k3 = jax.random.split(key, 3)

    # 1) Small harness shape: tiny-channel VPU path, T < 128 (single masked
    #    partial T block, no wrapper padding), two batches fused per step.
    args = _make_inputs(k1, B=2, C_in=4, C_out=4, T=16)
    out = jax.block_until_ready(dilated_conv1d(*args))
    ref = _reference(*args)
    assert out.shape == ref.shape
    assert jnp.allclose(out, ref, atol=1e-5, rtol=1e-5), "mismatch vs reference (tiny path)"

    # 2) MXU dot path, lane-aligned T (loose tolerance: MXU f32 matmul vs XLA
    #    einsum rounding).
    args = _make_inputs(k2, B=2, C_in=16, C_out=16, T=384)
    out = jax.block_until_ready(dilated_conv1d(*args))
    ref = _reference(*args)
    assert out.shape == ref.shape
    assert jnp.allclose(out, ref, atol=1e-2, rtol=1e-2), "mismatch vs reference (MXU path)"

    # 3) MXU path with ragged large T: exercises the cdiv grid + masked final
    #    partial block (no wrapper pad / slice).
    args = _make_inputs(k3, B=2, C_in=16, C_out=16, T=1000)
    out = jax.block_until_ready(dilated_conv1d(*args))
    ref = _reference(*args)
    assert out.shape == ref.shape
    assert jnp.allclose(out, ref, atol=1e-2, rtol=1e-2), "mismatch vs reference (ragged T)"

    print("KERNEL_OK")
</pallas_src>

<mosaic_0001>
module attributes {stable_mosaic.version = 11 : i64} {
  func.func @_dilated_conv1d_kernel(%arg0: i32, %arg1: i32, %arg2: memref<2x4x128xf32, #tpu.memory_space<vmem>>, %arg3: memref<2x4x128xf32, #tpu.memory_space<vmem>>, %arg4: memref<4x4xf32, #tpu.memory_space<vmem>>, %arg5: memref<4x4xf32, #tpu.memory_space<vmem>>, %arg6: memref<4x1xf32, #tpu.memory_space<vmem>>, %arg7: memref<2x4x128xf32, #tpu.memory_space<vmem>>) attributes {dimension_semantics = [#tpu.dimension_semantics<parallel>, #tpu.dimension_semantics<parallel>], iteration_bounds = array<i64: 1, 1>, scalar_prefetch = 0 : i64, scratch_operands = 0 : i64, tpu.core_type = #tpu.core_type<tc>, window_params = [{transform_indices = @transform_0, window_bounds = array<i64: 2, 4, 128>}, {transform_indices = @transform_1, window_bounds = array<i64: 2, 4, 128>}, {pipeline_mode = #tpu.pipeline_mode<synchronous>, transform_indices = @transform_2, window_bounds = array<i64: 4, 4>}, {pipeline_mode = #tpu.pipeline_mode<synchronous>, transform_indices = @transform_3, window_bounds = array<i64: 4, 4>}, {pipeline_mode = #tpu.pipeline_mode<synchronous>, transform_indices = @transform_4, window_bounds = array<i64: 4, 1>}, {transform_indices = @transform_5, window_bounds = array<i64: 2, 4, 128>}]} {
    %c0 = arith.constant 0 : index
    %c0_0 = arith.constant 0 : index
    %0 = vector.load %arg6[%c0, %c0_0] : memref<4x1xf32, #tpu.memory_space<vmem>>, vector<4x1xf32>
    %1 = vector.shape_cast %0 : vector<4x1xf32> to vector<4x1xf32>
    %2 = vector.broadcast %1 : vector<4x1xf32> to vector<4x128xf32>
    %c0_1 = arith.constant 0 : index
    %c0_2 = arith.constant 0 : index
    %3 = vector.load %arg4[%c0_1, %c0_2] : memref<4x4xf32, #tpu.memory_space<vmem>>, vector<4x4xf32>
    %c0_3 = arith.constant 0 : index
    %c0_4 = arith.constant 0 : index
    %4 = vector.load %arg5[%c0_3, %c0_4] : memref<4x4xf32, #tpu.memory_space<vmem>>, vector<4x4xf32>
    %c0_5 = arith.constant 0 : index
    %c0_6 = arith.constant 0 : index
    %c0_7 = arith.constant 0 : index
    %5 = vector.load %arg2[%c0_5, %c0_6, %c0_7] : memref<2x4x128xf32, #tpu.memory_space<vmem>>, vector<1x4x128xf32>
    %6 = vector.shape_cast %5 : vector<1x4x128xf32> to vector<4x128xf32>
    %c0_8 = arith.constant 0 : index
    %c0_9 = arith.constant 0 : index
    %c0_10 = arith.constant 0 : index
    %7 = vector.load %arg3[%c0_8, %c0_9, %c0_10] : memref<2x4x128xf32, #tpu.memory_space<vmem>>, vector<1x4x128xf32>
    %8 = vector.shape_cast %7 : vector<1x4x128xf32> to vector<4x128xf32>
    %9 = vector.extract_strided_slice %3 {offsets = [0, 0], sizes = [4, 1], strides = [1, 1]} : vector<4x4xf32> to vector<4x1xf32>
    %10 = vector.extract_strided_slice %6 {offsets = [0, 0], sizes = [1, 128], strides = [1, 1]} : vector<4x128xf32> to vector<1x128xf32>
    %11 = vector.broadcast %9 : vector<4x1xf32> to vector<4x128xf32>
    %12 = vector.broadcast %10 : vector<1x128xf32> to vector<4x128xf32>
    %13 = arith.mulf %11, %12 : vector<4x128xf32>
    %14 = arith.addf %2, %13 : vector<4x128xf32>
    %15 = vector.extract_strided_slice %4 {offsets = [0, 0], sizes = [4, 1], strides = [1, 1]} : vector<4x4xf32> to vector<4x1xf32>
    %16 = vector.extract_strided_slice %8 {offsets = [0, 0], sizes = [1, 128], strides = [1, 1]} : vector<4x128xf32> to vector<1x128xf32>
    %17 = vector.broadcast %15 : vector<4x1xf32> to vector<4x128xf32>
    %18 = vector.broadcast %16 : vector<1x128xf32> to vector<4x128xf32>
    %19 = arith.mulf %17, %18 : vector<4x128xf32>
    %20 = arith.addf %14, %19 : vector<4x128xf32>
    %21 = vector.extract_strided_slice %3 {offsets = [0, 1], sizes = [4, 1], strides = [1, 1]} : vector<4x4xf32> to vector<4x1xf32>
    %22 = vector.extract_strided_slice %6 {offsets = [1, 0], sizes = [1, 128], strides = [1, 1]} : vector<4x128xf32> to vector<1x128xf32>
    %23 = vector.broadcast %21 : vector<4x1xf32> to vector<4x128xf32>
    %24 = vector.broadcast %22 : vector<1x128xf32> to vector<4x128xf32>
    %25 = arith.mulf %23, %24 : vector<4x128xf32>
    %26 = arith.addf %20, %25 : vector<4x128xf32>
    %27 = vector.extract_strided_slice %4 {offsets = [0, 1], sizes = [4, 1], strides = [1, 1]} : vector<4x4xf32> to vector<4x1xf32>
    %28 = vector.extract_strided_slice %8 {offsets = [1, 0], sizes = [1, 128], strides = [1, 1]} : vector<4x128xf32> to vector<1x128xf32>
    %29 = vector.broadcast %27 : vector<4x1xf32> to vector<4x128xf32>
    %30 = vector.broadcast %28 : vector<1x128xf32> to vector<4x128xf32>
    %31 = arith.mulf %29, %30 : vector<4x128xf32>
    %32 = arith.addf %26, %31 : vector<4x128xf32>
    %33 = vector.extract_strided_slice %3 {offsets = [0, 2], sizes = [4, 1], strides = [1, 1]} : vector<4x4xf32> to vector<4x1xf32>
    %34 = vector.extract_strided_slice %6 {offsets = [2, 0], sizes = [1, 128], strides = [1, 1]} : vector<4x128xf32> to vector<1x128xf32>
    %35 = vector.broadcast %33 : vector<4x1xf32> to vector<4x128xf32>
    %36 = vector.broadcast %34 : vector<1x128xf32> to vector<4x128xf32>
    %37 = arith.mulf %35, %36 : vector<4x128xf32>
    %38 = arith.addf %32, %37 : vector<4x128xf32>
    %39 = vector.extract_strided_slice %4 {offsets = [0, 2], sizes = [4, 1], strides = [1, 1]} : vector<4x4xf32> to vector<4x1xf32>
    %40 = vector.extract_strided_slice %8 {offsets = [2, 0], sizes = [1, 128], strides = [1, 1]} : vector<4x128xf32> to vector<1x128xf32>
    %41 = vector.broadcast %39 : vector<4x1xf32> to vector<4x128xf32>
    %42 = vector.broadcast %40 : vector<1x128xf32> to vector<4x128xf32>
    %43 = arith.mulf %41, %42 : vector<4x128xf32>
    %44 = arith.addf %38, %43 : vector<4x128xf32>
    %45 = vector.extract_strided_slice %3 {offsets = [0, 3], sizes = [4, 1], strides = [1, 1]} : vector<4x4xf32> to vector<4x1xf32>
    %46 = vector.extract_strided_slice %6 {offsets = [3, 0], sizes = [1, 128], strides = [1, 1]} : vector<4x128xf32> to vector<1x128xf32>
    %47 = vector.broadcast %45 : vector<4x1xf32> to vector<4x128xf32>
    %48 = vector.broadcast %46 : vector<1x128xf32> to vector<4x128xf32>
    %49 = arith.mulf %47, %48 : vector<4x128xf32>
    %50 = arith.addf %44, %49 : vector<4x128xf32>
    %51 = vector.extract_strided_slice %4 {offsets = [0, 3], sizes = [4, 1], strides = [1, 1]} : vector<4x4xf32> to vector<4x1xf32>
    %52 = vector.extract_strided_slice %8 {offsets = [3, 0], sizes = [1, 128], strides = [1, 1]} : vector<4x128xf32> to vector<1x128xf32>
    %53 = vector.broadcast %51 : vector<4x1xf32> to vector<4x128xf32>
    %54 = vector.broadcast %52 : vector<1x128xf32> to vector<4x128xf32>
    %55 = arith.mulf %53, %54 : vector<4x128xf32>
    %56 = arith.addf %50, %55 : vector<4x128xf32>
    %c0_11 = arith.constant 0 : index
    %c0_12 = arith.constant 0 : index
    %c0_13 = arith.constant 0 : index
    %57 = vector.load %arg7[%c0_11, %c0_12, %c0_13] : memref<2x4x128xf32, #tpu.memory_space<vmem>>, vector<1x4x128xf32>
    %58 = vector.shape_cast %57 : vector<1x4x128xf32> to vector<4x128xf32>
    %59 = vector.shape_cast %56 : vector<4x128xf32> to vector<1x4x128xf32>
    tpu.vector_store %arg7[%c0_11, %c0_12, %c0_13], %59 {strides = array<i32>} : memref<2x4x128xf32, #tpu.memory_space<vmem>>, vector<1x4x128xf32>,
    %c1 = arith.constant 1 : index
    %c0_14 = arith.constant 0 : index
    %c0_15 = arith.constant 0 : index
    %60 = vector.load %arg2[%c1, %c0_14, %c0_15] : memref<2x4x128xf32, #tpu.memory_space<vmem>>, vector<1x4x128xf32>
    %61 = vector.shape_cast %60 : vector<1x4x128xf32> to vector<4x128xf32>
    %c1_16 = arith.constant 1 : index
    %c0_17 = arith.constant 0 : index
    %c0_18 = arith.constant 0 : index
    %62 = vector.load %arg3[%c1_16, %c0_17, %c0_18] : memref<2x4x128xf32, #tpu.memory_space<vmem>>, vector<1x4x128xf32>
    %63 = vector.shape_cast %62 : vector<1x4x128xf32> to vector<4x128xf32>
    %64 = vector.extract_strided_slice %3 {offsets = [0, 0], sizes = [4, 1], strides = [1, 1]} : vector<4x4xf32> to vector<4x1xf32>
    %65 = vector.extract_strided_slice %61 {offsets = [0, 0], sizes = [1, 128], strides = [1, 1]} : vector<4x128xf32> to vector<1x128xf32>
    %66 = vector.broadcast %64 : vector<4x1xf32> to vector<4x128xf32>
    %67 = vector.broadcast %65 : vector<1x128xf32> to vector<4x128xf32>
    %68 = arith.mulf %66, %67 : vector<4x128xf32>
    %69 = arith.addf %2, %68 : vector<4x128xf32>
    %70 = vector.extract_strided_slice %4 {offsets = [0, 0], sizes = [4, 1], strides = [1, 1]} : vector<4x4xf32> to vector<4x1xf32>
    %71 = vector.extract_strided_slice %63 {offsets = [0, 0], sizes = [1, 128], strides = [1, 1]} : vector<4x128xf32> to vector<1x128xf32>
    %72 = vector.broadcast %70 : vector<4x1xf32> to vector<4x128xf32>
    %73 = vector.broadcast %71 : vector<1x128xf32> to vector<4x128xf32>
    %74 = arith.mulf %72, %73 : vector<4x128xf32>
    %75 = arith.addf %69, %74 : vector<4x128xf32>
    %76 = vector.extract_strided_slice %3 {offsets = [0, 1], sizes = [4, 1], strides = [1, 1]} : vector<4x4xf32> to vector<4x1xf32>
    %77 = vector.extract_strided_slice %61 {offsets = [1, 0], sizes = [1, 128], strides = [1, 1]} : vector<4x128xf32> to vector<1x128xf32>
    %78 = vector.broadcast %76 : vector<4x1xf32> to vector<4x128xf32>
    %79 = vector.broadcast %77 : vector<1x128xf32> to vector<4x128xf32>
    %80 = arith.mulf %78, %79 : vector<4x128xf32>
    %81 = arith.addf %75, %80 : vector<4x128xf32>
    %82 = vector.extract_strided_slice %4 {offsets = [0, 1], sizes = [4, 1], strides = [1, 1]} : vector<4x4xf32> to vector<4x1xf32>
    %83 = vector.extract_strided_slice %63 {offsets = [1, 0], sizes = [1, 128], strides = [1, 1]} : vector<4x128xf32> to vector<1x128xf32>
    %84 = vector.broadcast %82 : vector<4x1xf32> to vector<4x128xf32>
    %85 = vector.broadcast %83 : vector<1x128xf32> to vector<4x128xf32>
    %86 = arith.mulf %84, %85 : vector<4x128xf32>
    %87 = arith.addf %81, %86 : vector<4x128xf32>
    %88 = vector.extract_strided_slice %3 {offsets = [0, 2], sizes = [4, 1], strides = [1, 1]} : vector<4x4xf32> to vector<4x1xf32>
    %89 = vector.extract_strided_slice %61 {offsets = [2, 0], sizes = [1, 128], strides = [1, 1]} : vector<4x128xf32> to vector<1x128xf32>
    %90 = vector.broadcast %88 : vector<4x1xf32> to vector<4x128xf32>
    %91 = vector.broadcast %89 : vector<1x128xf32> to vector<4x128xf32>
    %92 = arith.mulf %90, %91 : vector<4x128xf32>
    %93 = arith.addf %87, %92 : vector<4x128xf32>
    %94 = vector.extract_strided_slice %4 {offsets = [0, 2], sizes = [4, 1], strides = [1, 1]} : vector<4x4xf32> to vector<4x1xf32>
    %95 = vector.extract_strided_slice %63 {offsets = [2, 0], sizes = [1, 128], strides = [1, 1]} : vector<4x128xf32> to vector<1x128xf32>
    %96 = vector.broadcast %94 : vector<4x1xf32> to vector<4x128xf32>
    %97 = vector.broadcast %95 : vector<1x128xf32> to vector<4x128xf32>
    %98 = arith.mulf %96, %97 : vector<4x128xf32>
    %99 = arith.addf %93, %98 : vector<4x128xf32>
    %100 = vector.extract_strided_slice %3 {offsets = [0, 3], sizes = [4, 1], strides = [1, 1]} : vector<4x4xf32> to vector<4x1xf32>
    %101 = vector.extract_strided_slice %61 {offsets = [3, 0], sizes = [1, 128], strides = [1, 1]} : vector<4x128xf32> to vector<1x128xf32>
    %102 = vector.broadcast %100 : vector<4x1xf32> to vector<4x128xf32>
    %103 = vector.broadcast %101 : vector<1x128xf32> to vector<4x128xf32>
    %104 = arith.mulf %102, %103 : vector<4x128xf32>
    %105 = arith.addf %99, %104 : vector<4x128xf32>
    %106 = vector.extract_strided_slice %4 {offsets = [0, 3], sizes = [4, 1], strides = [1, 1]} : vector<4x4xf32> to vector<4x1xf32>
    %107 = vector.extract_strided_slice %63 {offsets = [3, 0], sizes = [1, 128], strides = [1, 1]} : vector<4x128xf32> to vector<1x128xf32>
    %108 = vector.broadcast %106 : vector<4x1xf32> to vector<4x128xf32>
    %109 = vector.broadcast %107 : vector<1x128xf32> to vector<4x128xf32>
    %110 = arith.mulf %108, %109 : vector<4x128xf32>
    %111 = arith.addf %105, %110 : vector<4x128xf32>
    %c1_19 = arith.constant 1 : index
    %c0_20 = arith.constant 0 : index
    %c0_21 = arith.constant 0 : index
    %112 = vector.load %arg7[%c1_19, %c0_20, %c0_21] : memref<2x4x128xf32, #tpu.memory_space<vmem>>, vector<1x4x128xf32>
    %113 = vector.shape_cast %112 : vector<1x4x128xf32> to vector<4x128xf32>
    %114 = vector.shape_cast %111 : vector<4x128xf32> to vector<1x4x128xf32>
    tpu.vector_store %arg7[%c1_19, %c0_20, %c0_21], %114 {strides = array<i32>} : memref<2x4x128xf32, #tpu.memory_space<vmem>>, vector<1x4x128xf32>,
    return
  }
  func.func @transform_0(%arg0: i32, %arg1: i32) -> (i32, i32, i32) {
    %c0_i32 = arith.constant 0 : i32
    %c0_i32_0 = arith.constant 0 : i32
    return %arg0, %c0_i32, %arg1 : i32, i32, i32
  }
  func.func @transform_1(%arg0: i32, %arg1: i32) -> (i32, i32, i32) {
    %c0_i32 = arith.constant 0 : i32
    %c0_i32_0 = arith.constant 0 : i32
    return %arg0, %c0_i32, %arg1 : i32, i32, i32
  }
  func.func @transform_2(%arg0: i32, %arg1: i32) -> (i32, i32) {
    %c0_i32 = arith.constant 0 : i32
    %c0_i32_0 = arith.constant 0 : i32
    %c0_i32_1 = arith.constant 0 : i32
    return %c0_i32, %c0_i32_0 : i32, i32
  }
  func.func @transform_3(%arg0: i32, %arg1: i32) -> (i32, i32) {
    %c0_i32 = arith.constant 0 : i32
    %c0_i32_0 = arith.constant 0 : i32
    %c0_i32_1 = arith.constant 0 : i32
    return %c0_i32, %c0_i32_0 : i32, i32
  }
  func.func @transform_4(%arg0: i32, %arg1: i32) -> (i32, i32) {
    %c0_i32 = arith.constant 0 : i32
    %c0_i32_0 = arith.constant 0 : i32
    %c0_i32_1 = arith.constant 0 : i32
    return %c0_i32, %c0_i32_0 : i32, i32
  }
  func.func @transform_5(%arg0: i32, %arg1: i32) -> (i32, i32, i32) {
    %c0_i32 = arith.constant 0 : i32
    %c0_i32_0 = arith.constant 0 : i32
    return %arg0, %c0_i32, %arg1 : i32, i32, i32
  }
}

</mosaic_0001>

<llo_original>
// kernel: tpu_custom_call.1
$region0: #{tpu_custom_call.1}
  #allocation0 [shape = 'u32[]', space=smem, size = 0x4, offset = 0x4, fixed_abs, tag = 'smem constant byte address 0x4 - core index']
  #allocation1 [shape = 'u32[72,128]{1,0:T(1,128)}', space=vmem, size = 0x9000, scoped, tag = 'internal scratch']
  %s0 = inlined_call_operand.hbm [shape: f32[2,4,16], index: 0, kind: input, shape index: {}]
  %s1 = inlined_call_operand.hbm [shape: f32[2,4,16], index: 1, kind: input, shape index: {}]
  %s2 = inlined_call_operand.vmem [shape: f32[4,4], index: 2, kind: input, shape index: {}]
  %s3 = inlined_call_operand.hbm [shape: f32[4,4], index: 3, kind: input, shape index: {}]
  %s4 = inlined_call_operand.vmem [shape: f32[4,1], index: 4, kind: input, shape index: {}]
  %s5 = inlined_call_operand.hbm [shape: f32[2,4,16], index: 5, kind: output, shape index: {}]
  %s6 = sld [smem:[#allocation0]]
  $region42: #{tpu_custom_call.1} parent=0
    _
  %s8 = ssub.s32 1, %s6
  %s9 = scalar_select 0, %s8, %s6
  $region1: #{tpu_custom_call.1} parent=0
    #allocation2 [shape = 'u8[4096]{0}', space=vmem, size = 0x1000, scoped, tag = 'input window, operand 0, single buffered']
    #allocation3 [shape = 's32[1]{0}', space=sflag, size = 0x4, scoped, tag = 'scoped memory for tpu_custom_call.1']
    #allocation4 [shape = 's32[1]{0}', space=sflag, size = 0x4, scoped, tag = 'scoped memory for tpu_custom_call.1']
    #allocation5 [shape = 'u8[4096]{0}', space=vmem, size = 0x1000, scoped, tag = 'input window, operand 1, single buffered']
    #allocation6 [shape = 's32[1]{0}', space=sflag, size = 0x4, scoped, tag = 'scoped memory for tpu_custom_call.1']
    #allocation7 [shape = 'u8[2048]{0}', space=vmem, size = 0x800, scoped, tag = 'input window, operand 3, single buffered']
    #allocation8 [shape = 'u8[4096]{0}', space=vmem, size = 0x1000, scoped, tag = 'output window, operand 0, single buffered']
    %10 = vsyncpa [#allocation3], 0
    %11 = vsyncpa [#allocation6], 0
    %12 = vsyncpa [#allocation4], 0
    // Predicated region
    $region2: #{tpu_custom_call.1} parent=1 // pred_check
      _
    $region3: #{tpu_custom_call.1} parent=1 // pred_check_branch
      %14 = sbr.rel (0) target = $region5
    $region4: #{tpu_custom_call.1} parent=1 // pred_region
      %16 = vsyncadd [#allocation3], 0
      %s17 = sshll.u32 %s0, 4
      %s18 = int_to_ptr.hbm [resolvable:$true] %s17
      %s19 = sshll.u32 [#allocation2], 4
      %s20 = int_to_ptr.vmem [resolvable:$true] %s19
      %25 = dma.hbm_to_vmem [thread:$0]  %s18, 128, %s20, [#allocation3], 64, 64, 4
    $region5: #{tpu_custom_call.1} parent=1 // pred_fallthru
      _
    // Predicated region
    $region6: #{tpu_custom_call.1} parent=1 // pred_check
      _
    $region7: #{tpu_custom_call.1} parent=1 // pred_check_branch
      %27 = sbr.rel (0) target = $region9
    $region8: #{tpu_custom_call.1} parent=1 // pred_region
      %29 = vsyncadd [#allocation6], 0
      %s30 = sshll.u32 %s1, 4
      %s31 = int_to_ptr.hbm [resolvable:$true] %s30
      %s32 = sshll.u32 [#allocation5], 4
      %s33 = int_to_ptr.vmem [resolvable:$true] %s32
      %38 = dma.hbm_to_vmem [thread:$0]  %s31, 128, %s33, [#allocation6], 64, 64, 4
    $region9: #{tpu_custom_call.1} parent=1 // pred_fallthru
      _
    // Predicated region
    $region10: #{tpu_custom_call.1} parent=1 // pred_check
      _
    $region11: #{tpu_custom_call.1} parent=1 // pred_check_branch
      %40 = sbr.rel (0) target = $region13
    $region12: #{tpu_custom_call.1} parent=1 // pred_region
      _
    $region13: #{tpu_custom_call.1} parent=1 // pred_fallthru
      _
    // Predicated region
    $region14: #{tpu_custom_call.1} parent=1 // pred_check
      _
    $region15: #{tpu_custom_call.1} parent=1 // pred_check_branch
      %42 = sbr.rel (0) target = $region17
    $region16: #{tpu_custom_call.1} parent=1 // pred_region
      %44 = vsyncadd [#allocation6], 0
      %s46 = sshll.u32 %s3, 4
      %s47 = int_to_ptr.hbm [resolvable:$true] %s46
      %s48 = sshll.u32 [#allocation7], 4
      %s49 = int_to_ptr.vmem [resolvable:$true] %s48
      %51 = dma.hbm_to_vmem [thread:$0]  %s47, 64, %s49, [#allocation6]
    $region17: #{tpu_custom_call.1} parent=1 // pred_fallthru
      _
    // Predicated region
    $region18: #{tpu_custom_call.1} parent=1 // pred_check
      _
    $region19: #{tpu_custom_call.1} parent=1 // pred_check_branch
      %53 = sbr.rel (0) target = $region21
    $region20: #{tpu_custom_call.1} parent=1 // pred_region
      _
    $region21: #{tpu_custom_call.1} parent=1 // pred_fallthru
      _
    // Predicated region
    $region22: #{tpu_custom_call.1} parent=1 // pred_check
      _
    $region23: #{tpu_custom_call.1} parent=1 // pred_check_branch
      %55 = sbr.rel (0) target = $region25
    $region24: #{tpu_custom_call.1} parent=1 // pred_region
      %57 = dma.done [#allocation3], 128
    $region25: #{tpu_custom_call.1} parent=1 // pred_fallthru
      _
    // Predicated region
    $region26: #{tpu_custom_call.1} parent=1 // pred_check
      _
    $region27: #{tpu_custom_call.1} parent=1 // pred_check_branch
      %59 = sbr.rel (0) target = $region29
    $region28: #{tpu_custom_call.1} parent=1 // pred_region
      %61 = dma.done [#allocation6], 128
    $region29: #{tpu_custom_call.1} parent=1 // pred_fallthru
      _
    // Predicated region
    $region30: #{tpu_custom_call.1} parent=1 // pred_check
      _
    $region31: #{tpu_custom_call.1} parent=1 // pred_check_branch
      %63 = sbr.rel (0) target = $region33
    $region32: #{tpu_custom_call.1} parent=1 // pred_region
      %65 = dma.done [#allocation6], 64
    $region33: #{tpu_custom_call.1} parent=1 // pred_fallthru
      _
    %v66 = vld [vmem:[%s4] sm:$0xf]
    %68 = vset.pattern.permute.xlu0 0
    %69 = vperm.xlu0 %68, %v66
    %v70 = vpop.permute.xlu0 %69
    %v72 = vld [vmem:[%s2] sm:$0xf]
    %v73 = vld [vmem:[#allocation7] sm:$0xf]
    %v74 = vld [vmem:[#allocation2] sm:$0xf]
    %v75 = vld [vmem:[#allocation5] sm:$0xf]
    %77 = vset.pattern.permute.xlu0 0
    %78 = vperm.xlu0 %77, %v72
    %v79 = vpop.permute.xlu0 %78
    %v81 = vperm.slane %v74, 0
    %v82 = vmul.f32 %v79, %v81
    %v83 = vadd.f32 %v70, %v82
    %85 = vset.pattern.permute.xlu0 0
    %86 = vperm.xlu0 %85, %v73
    %v87 = vpop.permute.xlu0 %86
    %v89 = vperm.slane %v75, 0
    %v90 = vmul.f32 %v87, %v89
    %v91 = vadd.f32 %v83, %v90
    %92 = vset.pattern.permute.xlu0 1
    %93 = vperm.xlu0 %92, %v72
    %v94 = vpop.permute.xlu0 %93
    %v96 = vperm.slane %v74, 1
    %v97 = vmul.f32 %v94, %v96
    %v98 = vadd.f32 %v91, %v97
    %99 = vset.pattern.permute.xlu0 1
    %100 = vperm.xlu0 %99, %v73
    %v101 = vpop.permute.xlu0 %100
    %v103 = vperm.slane %v75, 1
    %v104 = vmul.f32 %v101, %v103
    %v105 = vadd.f32 %v98, %v104
    %106 = vset.pattern.permute.xlu0 2
    %107 = vperm.xlu0 %106, %v72
    %v108 = vpop.permute.xlu0 %107
    %v110 = vperm.slane %v74, 2
    %v111 = vmul.f32 %v108, %v110
    %v112 = vadd.f32 %v105, %v111
    %113 = vset.pattern.permute.xlu0 2
    %114 = vperm.xlu0 %113, %v73
    %v115 = vpop.permute.xlu0 %114
    %v117 = vperm.slane %v75, 2
    %v118 = vmul.f32 %v115, %v117
    %v119 = vadd.f32 %v112, %v118
    %120 = vset.pattern.permute.xlu0 3
    %121 = vperm.xlu0 %120, %v72
    %v122 = vpop.permute.xlu0 %121
    %v124 = vperm.slane %v74, 3
    %v125 = vmul.f32 %v122, %v124
    %v126 = vadd.f32 %v119, %v125
    %127 = vset.pattern.permute.xlu0 3
    %128 = vperm.xlu0 %127, %v73
    %v129 = vpop.permute.xlu0 %128
    %v131 = vperm.slane %v75, 3
    %v132 = vmul.f32 %v129, %v131
    %v133 = vadd.f32 %v126, %v132
    %134 = vst [vmem:[#allocation8] sm:$0xf] %v133
    %s135 = scalar_lea.vmem [#allocation2], 4
    %v136 = vld [vmem:[%s135] sm:$0xf]
    %s137 = scalar_lea.vmem [#allocation5], 4
    %v138 = vld [vmem:[%s137] sm:$0xf]
    %v139 = vperm.slane %v136, 0
    %v140 = vmul.f32 %v79, %v139
    %v141 = vadd.f32 %v70, %v140
    %v142 = vperm.slane %v138, 0
    %v143 = vmul.f32 %v87, %v142
    %v144 = vadd.f32 %v141, %v143
    %v145 = vperm.slane %v136, 1
    %v146 = vmul.f32 %v94, %v145
    %v147 = vadd.f32 %v144, %v146
    %v148 = vperm.slane %v138, 1
    %v149 = vmul.f32 %v101, %v148
    %v150 = vadd.f32 %v147, %v149
    %v151 = vperm.slane %v136, 2
    %v152 = vmul.f32 %v108, %v151
    %v153 = vadd.f32 %v150, %v152
    %v154 = vperm.slane %v138, 2
    %v155 = vmul.f32 %v115, %v154
    %v156 = vadd.f32 %v153, %v155
    %v157 = vperm.slane %v136, 3
    %v158 = vmul.f32 %v122, %v157
    %v159 = vadd.f32 %v156, %v158
    %v160 = vperm.slane %v138, 3
    %v161 = vmul.f32 %v129, %v160
    %v162 = vadd.f32 %v159, %v161
    %s163 = scalar_lea.vmem [#allocation8], 4
    %164 = vst [vmem:[%s163] sm:$0xf] %v162
    // Predicated region
    $region34: #{tpu_custom_call.1} parent=1 // pred_check
      _
    $region35: #{tpu_custom_call.1} parent=1 // pred_check_branch
      %166 = sbr.rel (0) target = $region37
    $region36: #{tpu_custom_call.1} parent=1 // pred_region
      %168 = vsyncadd [#allocation4], 0
      %s169 = sshll.u32 [#allocation8], 4
      %s170 = int_to_ptr.vmem [resolvable:$true] %s169
      %s171 = sshll.u32 %s5, 4
      %s172 = int_to_ptr.hbm [resolvable:$true] %s171
      %177 = dma.vmem_to_hbm [thread:$0]  %s170, 128, %s172, [#allocation4], 64, 64, 4
    $region37: #{tpu_custom_call.1} parent=1 // pred_fallthru
      _
    // Predicated region
    $region38: #{tpu_custom_call.1} parent=1 // pred_check
      _
    $region39: #{tpu_custom_call.1} parent=1 // pred_check_branch
      %179 = sbr.rel (0) target = $region41
    $region40: #{tpu_custom_call.1} parent=1 // pred_region
      %181 = dma.done [#allocation4], 128
    $region41: #{tpu_custom_call.1} parent=1 // pred_fallthru
      _
    %182 = vsyncpa [#allocation3], 1
    %183 = vsyncpa [#allocation6], 1
    %184 = vsyncpa [#allocation4], 1

</llo_original>
